<compile_context>
chip_gen: v7x
topology: tpu7x:2x2x1
jax: 0.10.0
libtpu: 0.0.40
codegen_flags: <defaults>
</compile_context>

<pallas_src>
import functools

import jax
import jax.numpy as jnp
from jax.experimental import pallas as pl
from jax.experimental.pallas import tpu as pltpu


def _affine_kernel(x_ref, w_ref, y_ref, o_ref, acc_ref):
    k = pl.program_id(2)

    @pl.when(k == 0)
    def _():
        acc_ref[...] = jnp.zeros_like(acc_ref)

    # MXU matmul with f32 accumulation (correct for bf16/large K).
    acc_ref[...] += jnp.dot(
        x_ref[...], w_ref[...], preferred_element_type=jnp.float32
    )

    @pl.when(k == pl.num_programs(2) - 1)
    def _():
        # Bias add done once, in f32, then cast to the output dtype.
        o_ref[...] = (acc_ref[...] + y_ref[...].astype(jnp.float32)).astype(
            o_ref.dtype
        )


@functools.partial(jax.jit, static_argnames=("tm", "tn", "tk"))
def _affine_pallas(x, w, y, *, tm=128, tn=128, tk=256):
    M, K = x.shape
    K2, N = w.shape
    assert K == K2 and y.shape == (M, N)
    assert M % tm == 0 and N % tn == 0 and K % tk == 0

    grid = (M // tm, N // tn, K // tk)
    return pl.pallas_call(
        _affine_kernel,
        out_shape=jax.ShapeDtypeStruct((M, N), x.dtype),
        grid_spec=pltpu.PrefetchScalarGridSpec(
            num_scalar_prefetch=0,
            grid=grid,
            in_specs=[
                pl.BlockSpec((tm, tk), lambda i, j, k: (i, k)),   # x
                pl.BlockSpec((tk, tn), lambda i, j, k: (k, j)),   # W
                pl.BlockSpec((tm, tn), lambda i, j, k: (i, j)),   # y (resident over k)
            ],
            out_specs=pl.BlockSpec((tm, tn), lambda i, j, k: (i, j)),
            scratch_shapes=[pltpu.VMEM((tm, tn), jnp.float32)],
        ),
        compiler_params=pltpu.CompilerParams(
            dimension_semantics=("parallel", "parallel", "arbitrary"),
        ),
    )(x, w, y)


class TwoArgAffine:
    """Inner module needing two positional arguments: f(x, y) = x @ W + y."""

    def __init__(self, weight):
        self.weight = weight

    def __call__(self, x, y):
        return _affine_pallas(x, self.weight, y)


class OneArgumentModule:
    """An adapter for modules that want several arguments (forward(input) = inner(*input))."""

    def __init__(self, module):
        self.inner_module = module

    def __call__(self, input):
        return self.inner_module(*input)


if __name__ == "__main__":
    # Small, tile-aligned problem: M=256, K=512, N=256 (tm=tn=128, tk=256).
    key = jax.random.PRNGKey(0)
    kx, kw, ky = jax.random.split(key, 3)
    M, K, N = 256, 512, 256
    x = jax.random.normal(kx, (M, K), dtype=jnp.float32)
    w = jax.random.normal(kw, (K, N), dtype=jnp.float32)
    y = jax.random.normal(ky, (M, N), dtype=jnp.float32)

    module = OneArgumentModule(TwoArgAffine(w))
    out = module((x, y))          # adapter unpacks the tuple -> inner(x, y)
    out = jax.block_until_ready(out)

    # Reference check (pure JAX).
    ref = x @ w + y
    err = float(jnp.max(jnp.abs(out - ref)))
    assert out.shape == (M, N)
    assert err < 1e-3, f"max abs err too large: {err}"

    print("KERNEL_OK")
</pallas_src>

<mosaic_0001>
module attributes {stable_mosaic.version = 11 : i64} {
  func.func @_affine_kernel(%arg0: i32, %arg1: i32, %arg2: i32, %arg3: memref<128x256xf32, #tpu.memory_space<vmem>>, %arg4: memref<256x128xf32, #tpu.memory_space<vmem>>, %arg5: memref<128x128xf32, #tpu.memory_space<vmem>>, %arg6: memref<128x128xf32, #tpu.memory_space<vmem>>, %arg7: memref<128x128xf32, #tpu.memory_space<vmem>>) attributes {dimension_semantics = [#tpu.dimension_semantics<parallel>, #tpu.dimension_semantics<parallel>, #tpu.dimension_semantics<arbitrary>], iteration_bounds = array<i64: 2, 2, 2>, scalar_prefetch = 0 : i64, scratch_operands = 1 : i64, tpu.core_type = #tpu.core_type<tc>, window_params = [{transform_indices = @transform_0, window_bounds = array<i64: 128, 256>}, {transform_indices = @transform_1, window_bounds = array<i64: 256, 128>}, {transform_indices = @transform_2, window_bounds = array<i64: 128, 128>}, {transform_indices = @transform_3, window_bounds = array<i64: 128, 128>}]} {
    %c0_i32 = arith.constant 0 : i32
    %0 = arith.cmpi eq, %arg2, %c0_i32 : i32
    %1 = arith.extui %0 : i1 to i32
    %c0_i32_0 = arith.constant 0 : i32
    %2 = arith.cmpi ne, %1, %c0_i32_0 : i32
    scf.if %2 {
      %cst_9 = arith.constant 0.000000e+00 : f32
      %12 = vector.broadcast %cst_9 : f32 to vector<128x128xf32>
      %c0_10 = arith.constant 0 : index
      %c0_11 = arith.constant 0 : index
      %13 = vector.load %arg7[%c0_10, %c0_11] : memref<128x128xf32, #tpu.memory_space<vmem>>, vector<128x128xf32>
      tpu.vector_store %arg7[%c0_10, %c0_11], %12 {strides = array<i32>} : memref<128x128xf32, #tpu.memory_space<vmem>>, vector<128x128xf32>,
    } else {
    }
    %c0 = arith.constant 0 : index
    %c0_1 = arith.constant 0 : index
    %3 = vector.load %arg7[%c0, %c0_1] : memref<128x128xf32, #tpu.memory_space<vmem>>, vector<128x128xf32>
    %c0_2 = arith.constant 0 : index
    %c0_3 = arith.constant 0 : index
    %4 = vector.load %arg3[%c0_2, %c0_3] : memref<128x256xf32, #tpu.memory_space<vmem>>, vector<128x256xf32>
    %c0_4 = arith.constant 0 : index
    %c0_5 = arith.constant 0 : index
    %5 = vector.load %arg4[%c0_4, %c0_5] : memref<256x128xf32, #tpu.memory_space<vmem>>, vector<256x128xf32>
    %cst = arith.constant dense<0.000000e+00> : vector<128x128xf32>
    %6 = tpu.matmul %4, %5, %cst {dimension_numbers = #tpu.dot_dimension_numbers<[1], [0], [0], [1], [0, 0, 1, 1], [], []>} : vector<128x256xf32>, vector<256x128xf32>, vector<128x128xf32> -> vector<128x128xf32>
    %7 = arith.addf %3, %6 : vector<128x128xf32>
    %c0_6 = arith.constant 0 : index
    %c0_7 = arith.constant 0 : index
    %8 = vector.load %arg7[%c0_6, %c0_7] : memref<128x128xf32, #tpu.memory_space<vmem>>, vector<128x128xf32>
    tpu.vector_store %arg7[%c0_6, %c0_7], %7 {strides = array<i32>} : memref<128x128xf32, #tpu.memory_space<vmem>>, vector<128x128xf32>,
    %c1_i32 = arith.constant 1 : i32
    %9 = arith.cmpi eq, %arg2, %c1_i32 : i32
    %10 = arith.extui %9 : i1 to i32
    %c0_i32_8 = arith.constant 0 : i32
    %11 = arith.cmpi ne, %10, %c0_i32_8 : i32
    scf.if %11 {
      %c0_9 = arith.constant 0 : index
      %c0_10 = arith.constant 0 : index
      %12 = vector.load %arg7[%c0_9, %c0_10] : memref<128x128xf32, #tpu.memory_space<vmem>>, vector<128x128xf32>
      %c0_11 = arith.constant 0 : index
      %c0_12 = arith.constant 0 : index
      %13 = vector.load %arg5[%c0_11, %c0_12] : memref<128x128xf32, #tpu.memory_space<vmem>>, vector<128x128xf32>
      %14 = arith.addf %12, %13 : vector<128x128xf32>
      %c0_13 = arith.constant 0 : index
      %c0_14 = arith.constant 0 : index
      %15 = vector.load %arg6[%c0_13, %c0_14] : memref<128x128xf32, #tpu.memory_space<vmem>>, vector<128x128xf32>
      tpu.vector_store %arg6[%c0_13, %c0_14], %14 {strides = array<i32>} : memref<128x128xf32, #tpu.memory_space<vmem>>, vector<128x128xf32>,
    } else {
    }
    return
  }
  func.func @transform_0(%arg0: i32, %arg1: i32, %arg2: i32) -> (i32, i32) {
    %c0_i32 = arith.constant 0 : i32
    return %arg0, %arg2 : i32, i32
  }
  func.func @transform_1(%arg0: i32, %arg1: i32, %arg2: i32) -> (i32, i32) {
    %c0_i32 = arith.constant 0 : i32
    return %arg2, %arg1 : i32, i32
  }
  func.func @transform_2(%arg0: i32, %arg1: i32, %arg2: i32) -> (i32, i32) {
    %c0_i32 = arith.constant 0 : i32
    return %arg0, %arg1 : i32, i32
  }
  func.func @transform_3(%arg0: i32, %arg1: i32, %arg2: i32) -> (i32, i32) {
    %c0_i32 = arith.constant 0 : i32
    return %arg0, %arg1 : i32, i32
  }
}

</mosaic_0001>

<llo_original>
// kernel: _affine_pallas.1
$region0: #{_affine_pallas.1}
  #allocation0 [shape = 'u32[]', space=smem, size = 0x4, offset = 0x4, fixed_abs, tag = 'smem constant byte address 0x4 - core index']
  #allocation1 [shape = 'u32[144,128]{1,0:T(1,128)}', space=vmem, size = 0x12000, scoped, tag = 'internal scratch']
  #allocation2 [shape = 'f32[128,128]{1,0:T(8,128)}', space=vmem, size = 0x10000, scoped, tag = 'scratch operand']
  %s0 = inlined_call_operand.hbm [shape: f32[256,512], index: 0, kind: input, shape index: {}]
  %s1 = inlined_call_operand.hbm [shape: f32[512,256], index: 1, kind: input, shape index: {}]
  %s2 = inlined_call_operand.hbm [shape: f32[256,256], index: 2, kind: input, shape index: {}]
  %s3 = inlined_call_operand.hbm [shape: f32[256,256], index: 3, kind: output, shape index: {}]
  %s4 = sld [smem:[#allocation0]]
  $region65: #{_affine_pallas.1} parent=0
    _
  %s6 = ssub.s32 1, %s4
  %s7 = scalar_select 0, %s6, %s4
  $region1: #{_affine_pallas.1} parent=0
    #allocation3 [shape = 'u8[262144]{0}', space=vmem, size = 0x40000, scoped, tag = 'input window, operand 0']
    #allocation4 [shape = 's32[2]{0}', space=sflag, size = 0x8, scoped, tag = 'scoped memory for _affine_pallas.1']
    #allocation5 [shape = 's32[2]{0}', space=sflag, size = 0x8, scoped, tag = 'scoped memory for _affine_pallas.1']
    #allocation6 [shape = 'u8[262144]{0}', space=vmem, size = 0x40000, scoped, tag = 'input window, operand 1']
    #allocation7 [shape = 's32[2]{0}', space=sflag, size = 0x8, scoped, tag = 'scoped memory for _affine_pallas.1']
    #allocation8 [shape = 'u8[131072]{0}', space=vmem, size = 0x20000, scoped, tag = 'input window, operand 2']
    #allocation9 [shape = 'u8[131072]{0}', space=vmem, size = 0x20000, scoped, tag = 'output window, operand 0']
    %8 = vsyncpa [#allocation4], 0
    %s9 = scalar_lea.sflag [#allocation4], 1
    %10 = vsyncpa %s9, 0
    %11 = vsyncpa [#allocation7], 0
    %s12 = scalar_lea.sflag [#allocation7], 1
    %13 = vsyncpa %s12, 0
    %14 = vsyncpa [#allocation5], 0
    %s15 = scalar_lea.sflag [#allocation5], 1
    %16 = vsyncpa %s15, 0
    loop: start=0, step=1, limit=10
    $region2: #{_affine_pallas.1} parent=1 // loop_pre_header
      _
    $region3: #{_affine_pallas.1} parent=1 // loop_header
      %s18 = sphi 0, %s22
      %p19 = scmp.ge.s32.totalorder %s18, 10
      %s25 = sphi 0, %s44
      %s26 = sphi 0, %s40
      %s27 = sphi 0, %s36
      %s28 = sphi 0, %s25
      %s29 = sphi 0, %s26
      %s30 = sphi 0, %s27
      %s31 = sphi 0, %s28
      %s32 = sphi 0, %s29
      %s33 = sphi 0, %s30
      %s49 = sphi 0, %s51
      %s52 = sphi 0, %s49
      %s53 = sphi 0, %s52
      %s69 = sphi 0, %s53
      %s77 = sphi 0, %s79
      %s80 = sphi 0, %s77
      %s81 = sphi 0, %s80
      %s97 = sphi 0, %s81
      %s105 = sphi 0, %s107
      %s108 = sphi 0, %s105
      %s109 = sphi 0, %s108
      %s125 = sphi 0, %s109
      %s133 = sphi 0, %s135
      %s136 = sphi 0, %s133
      %s137 = sphi 0, %s136
      %s153 = sphi 0, %s137
    $region4: #{_affine_pallas.1} parent=1 // loop_header_branch
      %21 = sbr.rel (%p19) target = $region8
    $region5: #{_affine_pallas.1} parent=1 // loop_body
      %s23 = ssub.s32 %s18, 1
      %s24 = ssub.s32 %s18, 2
      %s34 = sadd.s32 1, %s27
      %p35 = scmp.ge.s32.totalorder %s34, 2
      %s36 = scalar_select %p35, 0, %s34
      %s37 = sadd.s32 1, %s26
      %s38 = scalar_select %p35, %s37, %s26
      %p39 = scmp.ge.s32.totalorder %s38, 2
      %s40 = scalar_select %p39, 0, %s38
      %s41 = sadd.s32 1, %s25
      %s42 = scalar_select %p39, %s41, %s25
      %p43 = scmp.ge.s32.totalorder %s42, 2
      %s44 = scalar_select %p43, 0, %s42
      %s45 = ssub.s32 %s25, %s44
      %s46 = ssub.s32 %s27, %s36
      %s47 = sor.u32 %s45, %s46
      %p48 = scmp.eq.s32.totalorder %s47, 0
      %s50 = sadd.s32 %s49, 1
      %s51 = scalar_select %p48, %s49, %s50
      %p54 = pneg %p48
      %p55 = scmp.eq.s32.totalorder %s18, 7
      %p56 = por %p54, %p55
      %p57 = scmp.ne.s32.totalorder %s49, %s52
      %p58 = scmp.eq.s32.totalorder %s18, 0
      %p59 = por %p57, %p58
      %p60 = scmp.ne.s32.totalorder %s49, %s52
      %p61 = scmp.eq.s32.totalorder %s23, 7
      %p62 = por %p60, %p61
      %p63 = scmp.ne.s32.totalorder %s52, %s53
      %p64 = scmp.eq.s32.totalorder %s23, 0
      %p65 = por %p63, %p64
      %p66 = scmp.ne.s32.totalorder %s52, %s53
      %p67 = scmp.eq.s32.totalorder %s24, 7
      %p68 = por %p66, %p67
      %p70 = scmp.ne.s32.totalorder %s53, %s69
      %p71 = scmp.eq.s32.totalorder %s24, 0
      %p72 = por %p70, %p71
      %s73 = ssub.s32 %s27, %s36
      %s74 = ssub.s32 %s26, %s40
      %s75 = sor.u32 %s73, %s74
      %p76 = scmp.eq.s32.totalorder %s75, 0
      %s78 = sadd.s32 %s77, 1
      %s79 = scalar_select %p76, %s77, %s78
      %p82 = pneg %p76
      %p83 = scmp.eq.s32.totalorder %s18, 7
      %p84 = por %p82, %p83
      %p85 = scmp.ne.s32.totalorder %s77, %s80
      %p86 = scmp.eq.s32.totalorder %s18, 0
      %p87 = por %p85, %p86
      %p88 = scmp.ne.s32.totalorder %s77, %s80
      %p89 = scmp.eq.s32.totalorder %s23, 7
      %p90 = por %p88, %p89
      %p91 = scmp.ne.s32.totalorder %s80, %s81
      %p92 = scmp.eq.s32.totalorder %s23, 0
      %p93 = por %p91, %p92
      %p94 = scmp.ne.s32.totalorder %s80, %s81
      %p95 = scmp.eq.s32.totalorder %s24, 7
      %p96 = por %p94, %p95
      %p98 = scmp.ne.s32.totalorder %s81, %s97
      %p99 = scmp.eq.s32.totalorder %s24, 0
      %p100 = por %p98, %p99
      %s101 = ssub.s32 %s25, %s44
      %s102 = ssub.s32 %s26, %s40
      %s103 = sor.u32 %s101, %s102
      %p104 = scmp.eq.s32.totalorder %s103, 0
      %s106 = sadd.s32 %s105, 1
      %s107 = scalar_select %p104, %s105, %s106
      %p110 = pneg %p104
      %p111 = scmp.eq.s32.totalorder %s18, 7
      %p112 = por %p110, %p111
      %p113 = scmp.ne.s32.totalorder %s105, %s108
      %p114 = scmp.eq.s32.totalorder %s18, 0
      %p115 = por %p113, %p114
      %p116 = scmp.ne.s32.totalorder %s105, %s108
      %p117 = scmp.eq.s32.totalorder %s23, 7
      %p118 = por %p116, %p117
      %p119 = scmp.ne.s32.totalorder %s108, %s109
      %p120 = scmp.eq.s32.totalorder %s23, 0
      %p121 = por %p119, %p120
      %p122 = scmp.ne.s32.totalorder %s108, %s109
      %p123 = scmp.eq.s32.totalorder %s24, 7
      %p124 = por %p122, %p123
      %p126 = scmp.ne.s32.totalorder %s109, %s125
      %p127 = scmp.eq.s32.totalorder %s24, 0
      %p128 = por %p126, %p127
      %s129 = ssub.s32 %s25, %s44
      %s130 = ssub.s32 %s26, %s40
      %s131 = sor.u32 %s129, %s130
      %p132 = scmp.eq.s32.totalorder %s131, 0
      %s134 = sadd.s32 %s133, 1
      %s135 = scalar_select %p132, %s133, %s134
      %p138 = pneg %p132
      %p139 = scmp.eq.s32.totalorder %s18, 7
      %p140 = por %p138, %p139
      %p141 = scmp.ne.s32.totalorder %s133, %s136
      %p142 = scmp.eq.s32.totalorder %s18, 0
      %p143 = por %p141, %p142
      %p144 = scmp.ne.s32.totalorder %s133, %s136
      %p145 = scmp.eq.s32.totalorder %s23, 7
      %p146 = por %p144, %p145
      %p147 = scmp.ne.s32.totalorder %s136, %s137
      %p148 = scmp.eq.s32.totalorder %s23, 0
      %p149 = por %p147, %p148
      %p150 = scmp.ne.s32.totalorder %s136, %s137
      %p151 = scmp.eq.s32.totalorder %s24, 7
      %p152 = por %p150, %p151
      %p154 = scmp.ne.s32.totalorder %s137, %s153
      %p155 = scmp.eq.s32.totalorder %s24, 0
      %p156 = por %p154, %p155
      %p157 = scmp.le.s32.totalorder 1, %s18
      %p158 = scmp.lt.s32.totalorder %s18, 9
      %p159 = pnand %p157, %p158
      %p160 = pneg %p159
      // Predicated region
      $region9: #{_affine_pallas.1} parent=5 // pred_check
        _
      $region10: #{_affine_pallas.1} parent=5 // pred_check_branch
        %162 = sbr.rel (%p159) target = $region12
      $region11: #{_affine_pallas.1} parent=5 // pred_region
        %s163 = ssub.s32 %s18, 1
      $region12: #{_affine_pallas.1} parent=5 // pred_fallthru
        _
      %p164 = scmp.lt.s32.totalorder %s18, 8
      // Predicated region
      $region13: #{_affine_pallas.1} parent=5 // pred_check
        %p165 = pneg %p164
      $region14: #{_affine_pallas.1} parent=5 // pred_check_branch
        %167 = sbr.rel (%p165) target = $region16
      $region15: #{_affine_pallas.1} parent=5 // pred_region
        // Predicated region
        $region17: #{_affine_pallas.1} parent=15 // pred_check
          %p168 = pneg %p59
        $region18: #{_affine_pallas.1} parent=15 // pred_check_branch
          %170 = sbr.rel (%p168) target = $region20
        $region19: #{_affine_pallas.1} parent=15 // pred_region
          %s171 = sand.u32 %s49, 1
          %s172 = scalar_lea.sflag [#allocation4], %s171
          %s173 = sand.u32 %s49, 1
          %s174 = smul.addr %s173, 256
          %s175 = scalar_lea.vmem [#allocation3], %s174
          %s176 = smul.u32 16, %s25
          %s177 = smul.u32 2, %s27
          %s179 = ssub.s32 4096, 4096
          %180 = vsyncadd %s172, %s179
          %s181 = smul.addr %s176, 4
          %s182 = sadd.s32 %s177, %s181
          %s183 = smul.addr %s182, 128
          %s184 = scalar_lea.hbm %s0, %s183
          %s185 = sshll.u32 %s175, 4
          %s186 = int_to_ptr.vmem [resolvable:$true] %s185
          %191 = dma.hbm_to_vmem [thread:$0]  %s184, 4096, %s186, %s172, 512, 256, 16
        $region20: #{_affine_pallas.1} parent=15 // pred_fallthru
          _
        // Predicated region
        $region21: #{_affine_pallas.1} parent=15 // pred_check
          %p192 = pneg %p87
        $region22: #{_affine_pallas.1} parent=15 // pred_check_branch
          %194 = sbr.rel (%p192) target = $region24
        $region23: #{_affine_pallas.1} parent=15 // pred_region
          %s195 = sand.u32 %s18, 1
          %s196 = scalar_lea.sflag [#allocation7], %s195
          %s197 = sand.u32 %s77, 1
          %s198 = smul.addr %s197, 256
          %s199 = scalar_lea.vmem [#allocation6], %s198
          %s200 = smul.u32 32, %s27
          %s202 = ssub.s32 4096, 4096
          %203 = vsyncadd %s196, %s202
          %s204 = smul.addr %s200, 2
          %s205 = sadd.s32 %s26, %s204
          %s206 = smul.addr %s205, 128
          %s207 = scalar_lea.hbm %s1, %s206
          %s208 = sshll.u32 %s199, 4
          %s209 = int_to_ptr.vmem [resolvable:$true] %s208
          %214 = dma.hbm_to_vmem [thread:$0]  %s207, 4096, %s209, %s196, 256, 128, 8
        $region24: #{_affine_pallas.1} parent=15 // pred_fallthru
          _
        // Predicated region
        $region25: #{_affine_pallas.1} parent=15 // pred_check
          %p215 = pneg %p115
        $region26: #{_affine_pallas.1} parent=15 // pred_check_branch
          %217 = sbr.rel (%p215) target = $region28
        $region27: #{_affine_pallas.1} parent=15 // pred_region
          %s218 = sand.u32 %s18, 1
          %s219 = scalar_lea.sflag [#allocation7], %s218
          %s220 = sand.u32 %s105, 1
          %s221 = smul.addr %s220, 128
          %s222 = scalar_lea.vmem [#allocation8], %s221
          %s223 = smul.u32 16, %s25
          %s225 = ssub.s32 2048, 2048
          %226 = vsyncadd %s219, %s225
          %s227 = smul.addr %s223, 2
          %s228 = sadd.s32 %s26, %s227
          %s229 = smul.addr %s228, 128
          %s230 = scalar_lea.hbm %s2, %s229
          %s231 = sshll.u32 %s222, 4
          %s232 = int_to_ptr.vmem [resolvable:$true] %s231
          %237 = dma.hbm_to_vmem [thread:$0]  %s230, 2048, %s232, %s219, 256, 128, 8
        $region28: #{_affine_pallas.1} parent=15 // pred_fallthru
          _
      $region16: #{_affine_pallas.1} parent=5 // pred_fallthru
        _
      %p238 = scmp.le.s32.totalorder 1, %s18
      %p239 = scmp.lt.s32.totalorder %s18, 9
      %p240 = pnand %p238, %p239
      %p241 = pneg %p240
      // Predicated region
      $region29: #{_affine_pallas.1} parent=5 // pred_check
        _
      $region30: #{_affine_pallas.1} parent=5 // pred_check_branch
        %243 = sbr.rel (%p240) target = $region32
      $region31: #{_affine_pallas.1} parent=5 // pred_region
        %s244 = ssub.s32 %s18, 1
        %s245 = sand.u32 %s52, 1
        %s246 = scalar_lea.sflag [#allocation4], %s245
        %s247 = sand.u32 %s52, 1
        %s248 = smul.addr %s247, 256
        %s249 = scalar_lea.vmem [#allocation3], %s248
        // Predicated region
        $region33: #{_affine_pallas.1} parent=31 // pred_check
          %p250 = pneg %p65
        $region34: #{_affine_pallas.1} parent=31 // pred_check_branch
          %252 = sbr.rel (%p250) target = $region36
        $region35: #{_affine_pallas.1} parent=31 // pred_region
          %253 = dma.done %s246, 4096
        $region36: #{_affine_pallas.1} parent=31 // pred_fallthru
          _
        %s254 = sand.u32 %s23, 1
        %s255 = scalar_lea.sflag [#allocation7], %s254
        %s256 = sand.u32 %s80, 1
        %s257 = smul.addr %s256, 256
        %s258 = scalar_lea.vmem [#allocation6], %s257
        // Predicated region
        $region37: #{_affine_pallas.1} parent=31 // pred_check
          %p259 = pneg %p93
        $region38: #{_affine_pallas.1} parent=31 // pred_check_branch
          %261 = sbr.rel (%p259) target = $region40
        $region39: #{_affine_pallas.1} parent=31 // pred_region
          %262 = dma.done %s255, 4096
        $region40: #{_affine_pallas.1} parent=31 // pred_fallthru
          _
        %s263 = sand.u32 %s23, 1
        %s264 = scalar_lea.sflag [#allocation7], %s263
        %s265 = sand.u32 %s108, 1
        %s266 = smul.addr %s265, 128
        %s267 = scalar_lea.vmem [#allocation8], %s266
        // Predicated region
        $region41: #{_affine_pallas.1} parent=31 // pred_check
          %p268 = pneg %p121
        $region42: #{_affine_pallas.1} parent=31 // pred_check_branch
          %270 = sbr.rel (%p268) target = $region44
        $region43: #{_affine_pallas.1} parent=31 // pred_region
          %271 = dma.done %s264, 2048
        $region44: #{_affine_pallas.1} parent=31 // pred_fallthru
          _
        %s272 = sand.u32 %s52, 1
        %s273 = scalar_lea.sflag [#allocation4], %s272
        %s274 = sand.u32 %s52, 1
        %s275 = smul.addr %s274, 256
        %s276 = scalar_lea.vmem [#allocation3], %s275
        %p277 = pneg %p65
        %p278 = pneg %p62
        %s279 = sand.u32 %s23, 1
        %s280 = scalar_lea.sflag [#allocation7], %s279
        %s281 = sand.u32 %s80, 1
        %s282 = smul.addr %s281, 256
        %s283 = scalar_lea.vmem [#allocation6], %s282
        %p284 = pneg %p93
        %p285 = pneg %p90
        %s286 = sand.u32 %s23, 1
        %s287 = scalar_lea.sflag [#allocation7], %s286
        %s288 = sand.u32 %s108, 1
        %s289 = smul.addr %s288, 128
        %s290 = scalar_lea.vmem [#allocation8], %s289
        %p291 = pneg %p121
        %p292 = pneg %p118
        %p293 = pneg %p149
        %p294 = pneg %p146
        %s295 = sand.u32 %s136, 1
        %s296 = scalar_lea.sflag [#allocation5], %s295
        %s297 = sand.u32 %s136, 1
        %s298 = smul.addr %s297, 128
        %s299 = scalar_lea.vmem [#allocation9], %s298
        %s300 = smul.u32 16, %s28
        %s301 = smul.u32 2, %s30
        %s302 = smul.u32 32, %s30
        %s303 = smul.u32 16, %s28
        %s304 = smul.u32 16, %s28
        %p305 = scmp.eq.s32.totalorder %s30, 0
        // Predicated region
        $region45: #{_affine_pallas.1} parent=31 // pred_check
          %p306 = pneg %p305
        $region46: #{_affine_pallas.1} parent=31 // pred_check_branch
          %308 = sbr.rel (%p306) target = $region48
        $region47: #{_affine_pallas.1} parent=31 // pred_region
          %309 = vst [vmem:[#allocation2] sm:$0xff] 0.0
          %310 = vst [vmem:[#allocation2 + $0x8] sm:$0xff] 0.0
          %311 = vst [vmem:[#allocation2 + $0x10] sm:$0xff] 0.0
          %312 = vst [vmem:[#allocation2 + $0x18] sm:$0xff] 0.0
          %313 = vst [vmem:[#allocation2 + $0x20] sm:$0xff] 0.0
          %314 = vst [vmem:[#allocation2 + $0x28] sm:$0xff] 0.0
          %315 = vst [vmem:[#allocation2 + $0x30] sm:$0xff] 0.0
          %316 = vst [vmem:[#allocation2 + $0x38] sm:$0xff] 0.0
          %317 = vst [vmem:[#allocation2 + $0x40] sm:$0xff] 0.0
          %318 = vst [vmem:[#allocation2 + $0x48] sm:$0xff] 0.0
          %319 = vst [vmem:[#allocation2 + $0x50] sm:$0xff] 0.0
          %320 = vst [vmem:[#allocation2 + $0x58] sm:$0xff] 0.0
          %321 = vst [vmem:[#allocation2 + $0x60] sm:$0xff] 0.0
          %322 = vst [vmem:[#allocation2 + $0x68] sm:$0xff] 0.0
          %323 = vst [vmem:[#allocation2 + $0x70] sm:$0xff] 0.0
          %324 = vst [vmem:[#allocation2 + $0x78] sm:$0xff] 0.0
        $region48: #{_affine_pallas.1} parent=31 // pred_fallthru
          _
        %v325 = vld [vmem:[#allocation2] sm:$0xff]
        %v326 = vld [vmem:[#allocation2 + $0x8] sm:$0xff]
        %v327 = vld [vmem:[#allocation2 + $0x10] sm:$0xff]
        %v328 = vld [vmem:[#allocation2 + $0x18] sm:$0xff]
        %v329 = vld [vmem:[#allocation2 + $0x20] sm:$0xff]
        %v330 = vld [vmem:[#allocation2 + $0x28] sm:$0xff]
        %v331 = vld [vmem:[#allocation2 + $0x30] sm:$0xff]
        %v332 = vld [vmem:[#allocation2 + $0x38] sm:$0xff]
        %v333 = vld [vmem:[#allocation2 + $0x40] sm:$0xff]
        %v334 = vld [vmem:[#allocation2 + $0x48] sm:$0xff]
        %v335 = vld [vmem:[#allocation2 + $0x50] sm:$0xff]
        %v336 = vld [vmem:[#allocation2 + $0x58] sm:$0xff]
        %v337 = vld [vmem:[#allocation2 + $0x60] sm:$0xff]
        %v338 = vld [vmem:[#allocation2 + $0x68] sm:$0xff]
        %v339 = vld [vmem:[#allocation2 + $0x70] sm:$0xff]
        %v340 = vld [vmem:[#allocation2 + $0x78] sm:$0xff]
        %v341 = vld [vmem:[%s249] sm:$0xff]
        %v342 = vld [vmem:[%s249 + $0x8] sm:$0xff]
        %v343 = vld [vmem:[%s249 + $0x10] sm:$0xff]
        %v344 = vld [vmem:[%s249 + $0x18] sm:$0xff]
        %v345 = vld [vmem:[%s249 + $0x20] sm:$0xff]
        %v346 = vld [vmem:[%s249 + $0x28] sm:$0xff]
        %v347 = vld [vmem:[%s249 + $0x30] sm:$0xff]
        %v348 = vld [vmem:[%s249 + $0x38] sm:$0xff]
        %v349 = vld [vmem:[%s249 + $0x40] sm:$0xff]
        %v350 = vld [vmem:[%s249 + $0x48] sm:$0xff]
        %v351 = vld [vmem:[%s249 + $0x50] sm:$0xff]
        %v352 = vld [vmem:[%s249 + $0x58] sm:$0xff]
        %v353 = vld [vmem:[%s249 + $0x60] sm:$0xff]
        %v354 = vld [vmem:[%s249 + $0x68] sm:$0xff]
        %v355 = vld [vmem:[%s249 + $0x70] sm:$0xff]
        %v356 = vld [vmem:[%s249 + $0x78] sm:$0xff]
        %v357 = vld [vmem:[%s249 + $0x80] sm:$0xff]
        %v358 = vld [vmem:[%s249 + $0x88] sm:$0xff]
        %v359 = vld [vmem:[%s249 + $0x90] sm:$0xff]
        %v360 = vld [vmem:[%s249 + $0x98] sm:$0xff]
        %v361 = vld [vmem:[%s249 + $0xa0] sm:$0xff]
        %v362 = vld [vmem:[%s249 + $0xa8] sm:$0xff]
        %v363 = vld [vmem:[%s249 + $0xb0] sm:$0xff]
        %v364 = vld [vmem:[%s249 + $0xb8] sm:$0xff]
        %v365 = vld [vmem:[%s249 + $0xc0] sm:$0xff]
        %v366 = vld [vmem:[%s249 + $0xc8] sm:$0xff]
        %v367 = vld [vmem:[%s249 + $0xd0] sm:$0xff]
        %v368 = vld [vmem:[%s249 + $0xd8] sm:$0xff]
        %v369 = vld [vmem:[%s249 + $0xe0] sm:$0xff]
        %v370 = vld [vmem:[%s249 + $0xe8] sm:$0xff]
        %v371 = vld [vmem:[%s249 + $0xf0] sm:$0xff]
        %v372 = vld [vmem:[%s249 + $0xf8] sm:$0xff]
        %v373 = vld [vmem:[%s258] sm:$0xff]
        %v374 = vld [vmem:[%s258 + $0x8] sm:$0xff]
        %v375 = vld [vmem:[%s258 + $0x10] sm:$0xff]
        %v376 = vld [vmem:[%s258 + $0x18] sm:$0xff]
        %v377 = vld [vmem:[%s258 + $0x20] sm:$0xff]
        %v378 = vld [vmem:[%s258 + $0x28] sm:$0xff]
        %v379 = vld [vmem:[%s258 + $0x30] sm:$0xff]
        %v380 = vld [vmem:[%s258 + $0x38] sm:$0xff]
        %v381 = vld [vmem:[%s258 + $0x40] sm:$0xff]
        %v382 = vld [vmem:[%s258 + $0x48] sm:$0xff]
        %v383 = vld [vmem:[%s258 + $0x50] sm:$0xff]
        %v384 = vld [vmem:[%s258 + $0x58] sm:$0xff]
        %v385 = vld [vmem:[%s258 + $0x60] sm:$0xff]
        %v386 = vld [vmem:[%s258 + $0x68] sm:$0xff]
        %v387 = vld [vmem:[%s258 + $0x70] sm:$0xff]
        %v388 = vld [vmem:[%s258 + $0x78] sm:$0xff]
        %v389 = vld [vmem:[%s258 + $0x80] sm:$0xff]
        %v390 = vld [vmem:[%s258 + $0x88] sm:$0xff]
        %v391 = vld [vmem:[%s258 + $0x90] sm:$0xff]
        %v392 = vld [vmem:[%s258 + $0x98] sm:$0xff]
        %v393 = vld [vmem:[%s258 + $0xa0] sm:$0xff]
        %v394 = vld [vmem:[%s258 + $0xa8] sm:$0xff]
        %v395 = vld [vmem:[%s258 + $0xb0] sm:$0xff]
        %v396 = vld [vmem:[%s258 + $0xb8] sm:$0xff]
        %v397 = vld [vmem:[%s258 + $0xc0] sm:$0xff]
        %v398 = vld [vmem:[%s258 + $0xc8] sm:$0xff]
        %v399 = vld [vmem:[%s258 + $0xd0] sm:$0xff]
        %v400 = vld [vmem:[%s258 + $0xd8] sm:$0xff]
        %v401 = vld [vmem:[%s258 + $0xe0] sm:$0xff]
        %v402 = vld [vmem:[%s258 + $0xe8] sm:$0xff]
        %v403 = vld [vmem:[%s258 + $0xf0] sm:$0xff]
        %v404 = vld [vmem:[%s258 + $0xf8] sm:$0xff]
        %405 = vmatprep.subr.mxu0 0.0
        %406 = vmatpush1.msra.mxu0 %v373
        %407 = vmatprep.subr.mxu0 0.0
        %408 = vmatpush1.msra.mxu0 %v374
        %409 = vmatprep.subr.mxu0 0.0
        %410 = vmatpush1.msra.mxu0 %v375
        %411 = vmatprep.subr.mxu0 0.0
        %412 = vmatpush1.msra.mxu0 %v376
        %413 = vmatprep.subr.mxu0 0.0
        %414 = vmatpush1.msra.mxu0 %v377
        %415 = vmatprep.subr.mxu0 0.0
        %416 = vmatpush1.msra.mxu0 %v378
        %417 = vmatprep.subr.mxu0 0.0
        %418 = vmatpush1.msra.mxu0 %v379
        %419 = vmatprep.subr.mxu0 0.0
        %420 = vmatpush1.msra.mxu0 %v380
        %421 = vmatprep.subr.mxu0 0.0
        %422 = vmatpush1.msra.mxu0 %v381
        %423 = vmatprep.subr.mxu0 0.0
        %424 = vmatpush1.msra.mxu0 %v382
        %425 = vmatprep.subr.mxu0 0.0
        %426 = vmatpush1.msra.mxu0 %v383
        %427 = vmatprep.subr.mxu0 0.0
        %428 = vmatpush1.msra.mxu0 %v384
        %429 = vmatprep.subr.mxu0 0.0
        %430 = vmatpush1.msra.mxu0 %v385
        %431 = vmatprep.subr.mxu0 0.0
        %432 = vmatpush1.msra.mxu0 %v386
        %433 = vmatprep.subr.mxu0 0.0
        %434 = vmatpush1.msra.mxu0 %v387
        %435 = vmatprep.subr.mxu0 0.0
        %436 = vmatpush1.msra.mxu0 %v388
        %437 = vmatprep.subr.mxu0 0.0
        %438 = vmatpush1.msra.mxu0 %v389
        %439 = vmatprep.subr.mxu0 0.0
        %440 = vmatpush1.msra.mxu0 %v390
        %441 = vmatprep.subr.mxu0 0.0
        %442 = vmatpush1.msra.mxu0 %v391
        %443 = vmatprep.subr.mxu0 0.0
        %444 = vmatpush1.msra.mxu0 %v392
        %445 = vmatprep.subr.mxu0 0.0
        %446 = vmatpush1.msra.mxu0 %v393
        %447 = vmatprep.subr.mxu0 0.0
        %448 = vmatpush1.msra.mxu0 %v394
        %449 = vmatprep.subr.mxu0 0.0
        %450 = vmatpush1.msra.mxu0 %v395
        %451 = vmatprep.subr.mxu0 0.0
        %452 = vmatpush1.msra.mxu0 %v396
        %453 = vmatprep.subr.mxu0 0.0
        %454 = vmatpush1.msra.mxu0 %v397
        %455 = vmatprep.subr.mxu0 0.0
        %456 = vmatpush1.msra.mxu0 %v398
        %457 = vmatprep.subr.mxu0 0.0
        %458 = vmatpush1.msra.mxu0 %v399
        %459 = vmatprep.subr.mxu0 0.0
        %460 = vmatpush1.msra.mxu0 %v400
        %461 = vmatprep.subr.mxu0 0.0
        %462 = vmatpush1.msra.mxu0 %v401
        %463 = vmatprep.subr.mxu0 0.0
        %464 = vmatpush1.msra.mxu0 %v402
        %465 = vmatprep.subr.mxu0 0.0
        %466 = vmatpush1.msra.mxu0 %v403
        %467 = vmatprep.subr.mxu0 0.0
        %468 = vmatpush1.msra.mxu0 %v404
        %469 = vmatprep.mubr.f32.mxu0 %v342
        %470 = vmatmul.mubr.f32.gmra.mrb[0].mxu0 %v341
        %v471 = vpop.f32.mrb[0].mxu0
        %v472 = vadd.f32 0.0, %v471
        %v473 = vpop.f32.mrb[0].mxu0
        %474 = vmatprep.mubr.f32.mxu0 %v344
        %475 = vmatmul.mubr.f32.gmra.mrb[0].mxu0 %v343
        %v476 = vpop.f32.mrb[0].mxu0
        %v477 = vadd.f32 0.0, %v476
        %v478 = vpop.f32.mrb[0].mxu0
        %479 = vmatprep.mubr.f32.mxu0 %v346
        %480 = vmatmul.mubr.f32.gmra.mrb[0].mxu0 %v345
        %v481 = vpop.f32.mrb[0].mxu0
        %v482 = vadd.f32 0.0, %v481
        %v483 = vpop.f32.mrb[0].mxu0
        %484 = vmatprep.mubr.f32.mxu0 %v348
        %485 = vmatmul.mubr.f32.gmra.mrb[0].mxu0 %v347
        %v486 = vpop.f32.mrb[0].mxu0
        %v487 = vadd.f32 0.0, %v486
        %v488 = vpop.f32.mrb[0].mxu0
        %489 = vmatprep.mubr.f32.mxu0 %v350
        %490 = vmatmul.mubr.f32.gmra.mrb[0].mxu0 %v349
        %v491 = vpop.f32.mrb[0].mxu0
        %v492 = vadd.f32 0.0, %v491
        %v493 = vpop.f32.mrb[0].mxu0
        %494 = vmatprep.mubr.f32.mxu0 %v352
        %495 = vmatmul.mubr.f32.gmra.mrb[0].mxu0 %v351
        %v496 = vpop.f32.mrb[0].mxu0
        %v497 = vadd.f32 0.0, %v496
        %v498 = vpop.f32.mrb[0].mxu0
        %499 = vmatprep.mubr.f32.mxu0 %v354
        %500 = vmatmul.mubr.f32.gmra.mrb[0].mxu0 %v353
        %v501 = vpop.f32.mrb[0].mxu0
        %v502 = vadd.f32 0.0, %v501
        %v503 = vpop.f32.mrb[0].mxu0
        %504 = vmatprep.mubr.f32.mxu0 %v356
        %505 = vmatmul.mubr.f32.gmra.mrb[0].mxu0 %v355
        %v506 = vpop.f32.mrb[0].mxu0
        %v507 = vadd.f32 0.0, %v506
        %v508 = vpop.f32.mrb[0].mxu0
        %509 = vmatprep.mubr.f32.mxu0 %v358
        %510 = vmatmul.mubr.f32.gmra.mrb[0].mxu0 %v357
        %v511 = vpop.f32.mrb[0].mxu0
        %v512 = vadd.f32 0.0, %v511
        %v513 = vpop.f32.mrb[0].mxu0
        %514 = vmatprep.mubr.f32.mxu0 %v360
        %515 = vmatmul.mubr.f32.gmra.mrb[0].mxu0 %v359
        %v516 = vpop.f32.mrb[0].mxu0
        %v517 = vadd.f32 0.0, %v516
        %v518 = vpop.f32.mrb[0].mxu0
        %519 = vmatprep.mubr.f32.mxu0 %v362
        %520 = vmatmul.mubr.f32.gmra.mrb[0].mxu0 %v361
        %v521 = vpop.f32.mrb[0].mxu0
        %v522 = vadd.f32 0.0, %v521
        %v523 = vpop.f32.mrb[0].mxu0
        %524 = vmatprep.mubr.f32.mxu0 %v364
        %525 = vmatmul.mubr.f32.gmra.mrb[0].mxu0 %v363
        %v526 = vpop.f32.mrb[0].mxu0
        %v527 = vadd.f32 0.0, %v526
        %v528 = vpop.f32.mrb[0].mxu0
        %529 = vmatprep.mubr.f32.mxu0 %v366
        %530 = vmatmul.mubr.f32.gmra.mrb[0].mxu0 %v365
        %v531 = vpop.f32.mrb[0].mxu0
        %v532 = vadd.f32 0.0, %v531
        %v533 = vpop.f32.mrb[0].mxu0
        %534 = vmatprep.mubr.f32.mxu0 %v368
        %535 = vmatmul.mubr.f32.gmra.mrb[0].mxu0 %v367
        %v536 = vpop.f32.mrb[0].mxu0
        %v537 = vadd.f32 0.0, %v536
        %v538 = vpop.f32.mrb[0].mxu0
        %539 = vmatprep.mubr.f32.mxu0 %v370
        %540 = vmatmul.mubr.f32.gmra.mrb[0].mxu0 %v369
        %v541 = vpop.f32.mrb[0].mxu0
        %v542 = vadd.f32 0.0, %v541
        %v543 = vpop.f32.mrb[0].mxu0
        %544 = vmatprep.mubr.f32.mxu0 %v372
        %545 = vmatmul.mubr.f32.gmra.mrb[0].mxu0 %v371
        %v546 = vpop.f32.mrb[0].mxu0
        %v547 = vadd.f32 0.0, %v546
        %v548 = vpop.f32.mrb[0].mxu0
        %549 = vdwg.mxu0
        %v550 = vadd.f32 %v325, %v472
        %v551 = vadd.f32 %v326, %v477
        %v552 = vadd.f32 %v327, %v482
        %v553 = vadd.f32 %v328, %v487
        %v554 = vadd.f32 %v329, %v492
        %v555 = vadd.f32 %v330, %v497
        %v556 = vadd.f32 %v331, %v502
        %v557 = vadd.f32 %v332, %v507
        %v558 = vadd.f32 %v333, %v512
        %v559 = vadd.f32 %v334, %v517
        %v560 = vadd.f32 %v335, %v522
        %v561 = vadd.f32 %v336, %v527
        %v562 = vadd.f32 %v337, %v532
        %v563 = vadd.f32 %v338, %v537
        %v564 = vadd.f32 %v339, %v542
        %v565 = vadd.f32 %v340, %v547
        %566 = vst [vmem:[#allocation2] sm:$0xff] %v550
        %567 = vst [vmem:[#allocation2 + $0x8] sm:$0xff] %v551
        %568 = vst [vmem:[#allocation2 + $0x10] sm:$0xff] %v552
        %569 = vst [vmem:[#allocation2 + $0x18] sm:$0xff] %v553
        %570 = vst [vmem:[#allocation2 + $0x20] sm:$0xff] %v554
        %571 = vst [vmem:[#allocation2 + $0x28] sm:$0xff] %v555
        %572 = vst [vmem:[#allocation2 + $0x30] sm:$0xff] %v556
        %573 = vst [vmem:[#allocation2 + $0x38] sm:$0xff] %v557
        %574 = vst [vmem:[#allocation2 + $0x40] sm:$0xff] %v558
        %575 = vst [vmem:[#allocation2 + $0x48] sm:$0xff] %v559
        %576 = vst [vmem:[#allocation2 + $0x50] sm:$0xff] %v560
        %577 = vst [vmem:[#allocation2 + $0x58] sm:$0xff] %v561
        %578 = vst [vmem:[#allocation2 + $0x60] sm:$0xff] %v562
        %579 = vst [vmem:[#allocation2 + $0x68] sm:$0xff] %v563
        %580 = vst [vmem:[#allocation2 + $0x70] sm:$0xff] %v564
        %581 = vst [vmem:[#allocation2 + $0x78] sm:$0xff] %v565
        %p582 = scmp.eq.s32.totalorder %s30, 1
        // Predicated region
        $region49: #{_affine_pallas.1} parent=31 // pred_check
          %p583 = pneg %p582
        $region50: #{_affine_pallas.1} parent=31 // pred_check_branch
          %585 = sbr.rel (%p583) target = $region52
        $region51: #{_affine_pallas.1} parent=31 // pred_region
          %v586 = vld [vmem:[#allocation2] sm:$0xff]
          %v587 = vld [vmem:[#allocation2 + $0x8] sm:$0xff]
          %v588 = vld [vmem:[#allocation2 + $0x10] sm:$0xff]
          %v589 = vld [vmem:[#allocation2 + $0x18] sm:$0xff]
          %v590 = vld [vmem:[#allocation2 + $0x20] sm:$0xff]
          %v591 = vld [vmem:[#allocation2 + $0x28] sm:$0xff]
          %v592 = vld [vmem:[#allocation2 + $0x30] sm:$0xff]
          %v593 = vld [vmem:[#allocation2 + $0x38] sm:$0xff]
          %v594 = vld [vmem:[#allocation2 + $0x40] sm:$0xff]
          %v595 = vld [vmem:[#allocation2 + $0x48] sm:$0xff]
          %v596 = vld [vmem:[#allocation2 + $0x50] sm:$0xff]
          %v597 = vld [vmem:[#allocation2 + $0x58] sm:$0xff]
          %v598 = vld [vmem:[#allocation2 + $0x60] sm:$0xff]
          %v599 = vld [vmem:[#allocation2 + $0x68] sm:$0xff]
          %v600 = vld [vmem:[#allocation2 + $0x70] sm:$0xff]
          %v601 = vld [vmem:[#allocation2 + $0x78] sm:$0xff]
          %v602 = vld [vmem:[%s267] sm:$0xff]
          %v603 = vld [vmem:[%s267 + $0x8] sm:$0xff]
          %v604 = vld [vmem:[%s267 + $0x10] sm:$0xff]
          %v605 = vld [vmem:[%s267 + $0x18] sm:$0xff]
          %v606 = vld [vmem:[%s267 + $0x20] sm:$0xff]
          %v607 = vld [vmem:[%s267 + $0x28] sm:$0xff]
          %v608 = vld [vmem:[%s267 + $0x30] sm:$0xff]
          %v609 = vld [vmem:[%s267 + $0x38] sm:$0xff]
          %v610 = vld [vmem:[%s267 + $0x40] sm:$0xff]
          %v611 = vld [vmem:[%s267 + $0x48] sm:$0xff]
          %v612 = vld [vmem:[%s267 + $0x50] sm:$0xff]
          %v613 = vld [vmem:[%s267 + $0x58] sm:$0xff]
          %v614 = vld [vmem:[%s267 + $0x60] sm:$0xff]
          %v615 = vld [vmem:[%s267 + $0x68] sm:$0xff]
          %v616 = vld [vmem:[%s267 + $0x70] sm:$0xff]
          %v617 = vld [vmem:[%s267 + $0x78] sm:$0xff]
          %v618 = vadd.f32 %v586, %v602
          %v619 = vadd.f32 %v587, %v603
          %v620 = vadd.f32 %v588, %v604
          %v621 = vadd.f32 %v589, %v605
          %v622 = vadd.f32 %v590, %v606
          %v623 = vadd.f32 %v591, %v607
          %v624 = vadd.f32 %v592, %v608
          %v625 = vadd.f32 %v593, %v609
          %v626 = vadd.f32 %v594, %v610
          %v627 = vadd.f32 %v595, %v611
          %v628 = vadd.f32 %v596, %v612
          %v629 = vadd.f32 %v597, %v613
          %v630 = vadd.f32 %v598, %v614
          %v631 = vadd.f32 %v599, %v615
          %v632 = vadd.f32 %v600, %v616
          %v633 = vadd.f32 %v601, %v617
          %634 = vst [vmem:[%s299] sm:$0xff] %v618
          %635 = vst [vmem:[%s299 + $0x8] sm:$0xff] %v619
          %636 = vst [vmem:[%s299 + $0x10] sm:$0xff] %v620
          %637 = vst [vmem:[%s299 + $0x18] sm:$0xff] %v621
          %638 = vst [vmem:[%s299 + $0x20] sm:$0xff] %v622
          %639 = vst [vmem:[%s299 + $0x28] sm:$0xff] %v623
          %640 = vst [vmem:[%s299 + $0x30] sm:$0xff] %v624
          %641 = vst [vmem:[%s299 + $0x38] sm:$0xff] %v625
          %642 = vst [vmem:[%s299 + $0x40] sm:$0xff] %v626
          %643 = vst [vmem:[%s299 + $0x48] sm:$0xff] %v627
          %644 = vst [vmem:[%s299 + $0x50] sm:$0xff] %v628
          %645 = vst [vmem:[%s299 + $0x58] sm:$0xff] %v629
          %646 = vst [vmem:[%s299 + $0x60] sm:$0xff] %v630
          %647 = vst [vmem:[%s299 + $0x68] sm:$0xff] %v631
          %648 = vst [vmem:[%s299 + $0x70] sm:$0xff] %v632
          %649 = vst [vmem:[%s299 + $0x78] sm:$0xff] %v633
        $region52: #{_affine_pallas.1} parent=31 // pred_fallthru
          _
        %s650 = sand.u32 %s136, 1
        %s651 = scalar_lea.sflag [#allocation5], %s650
        %s652 = sand.u32 %s136, 1
        %s653 = smul.addr %s652, 128
        %s654 = scalar_lea.vmem [#allocation9], %s653
        // Predicated region
        $region53: #{_affine_pallas.1} parent=31 // pred_check
          %p655 = pneg %p146
        $region54: #{_affine_pallas.1} parent=31 // pred_check_branch
          %657 = sbr.rel (%p655) target = $region56
        $region55: #{_affine_pallas.1} parent=31 // pred_region
          %s658 = smul.u32 16, %s28
          %s660 = ssub.s32 2048, 2048
          %661 = vsyncadd %s651, %s660
          %s662 = smul.addr %s658, 2
          %s663 = sadd.s32 %s29, %s662
          %s664 = smul.addr %s663, 128
          %s665 = scalar_lea.hbm %s3, %s664
          %s666 = sshll.u32 %s654, 4
          %s667 = int_to_ptr.vmem [resolvable:$true] %s666
          %672 = dma.vmem_to_hbm [thread:$0]  %s667, 2048, %s665, %s651, 128, 256, 8
        $region56: #{_affine_pallas.1} parent=31 // pred_fallthru
          _
      $region32: #{_affine_pallas.1} parent=5 // pred_fallthru
        _
      %p673 = scmp.le.s32.totalorder 2, %s18
      // Predicated region
      $region57: #{_affine_pallas.1} parent=5 // pred_check
        %p674 = pneg %p673
      $region58: #{_affine_pallas.1} parent=5 // pred_check_branch
        %676 = sbr.rel (%p674) target = $region60
      $region59: #{_affine_pallas.1} parent=5 // pred_region
        %s677 = ssub.s32 %s18, 2
        // Predicated region
        $region61: #{_affine_pallas.1} parent=59 // pred_check
          %p678 = pneg %p152
        $region62: #{_affine_pallas.1} parent=59 // pred_check_branch
          %680 = sbr.rel (%p678) target = $region64
        $region63: #{_affine_pallas.1} parent=59 // pred_region
          %s681 = sand.u32 %s137, 1
          %s682 = scalar_lea.sflag [#allocation5], %s681
          %s683 = sand.u32 %s137, 1
          %s684 = smul.addr %s683, 128
          %s685 = scalar_lea.vmem [#allocation9], %s684
          %686 = dma.done %s682, 2048
        $region64: #{_affine_pallas.1} parent=59 // pred_fallthru
          _
      $region60: #{_affine_pallas.1} parent=5 // pred_fallthru
        _
    $region6: #{_affine_pallas.1} parent=1 // loop_footer
      %s22 = sadd.s32 1, %s18
    $region7: #{_affine_pallas.1} parent=1 // loop_footer_branch
      %17 = sbr.rel target = $region3
    $region8: #{_affine_pallas.1} parent=1 // loop_exit
      _
    %687 = vsyncpa [#allocation4], 1
    %s688 = scalar_lea.sflag [#allocation4], 1
    %689 = vsyncpa %s688, 1
    %690 = vsyncpa [#allocation7], 1
    %s691 = scalar_lea.sflag [#allocation7], 1
    %692 = vsyncpa %s691, 1
    %693 = vsyncpa [#allocation5], 1
    %s694 = scalar_lea.sflag [#allocation5], 1
    %695 = vsyncpa %s694, 1

</llo_original>
